<compile_context>
chip_gen: v7x
topology: tpu7x:2x2x1
jax: 0.10.0
libtpu: 0.0.40
codegen_flags: <defaults>
</compile_context>

<pallas_src>
import functools

import numpy as np
import jax
import jax.numpy as jnp
from jax.experimental import pallas as pl
from jax.experimental.pallas import tpu as pltpu


def _copy_kernel(x_ref, o_ref):
    # Entire forward pass of DummyTransformerBlock: identity.
    o_ref[...] = x_ref[...]


_LANES = 128
# ~8 MiB per block: 2x(in) + 2x(out) double-buffers = 32 MiB, safe on v7x's
# 64 MiB VMEM and trivially safe on v5e/v6e's 128 MiB.
_MAX_BLOCK_BYTES = 8 << 20


def _pick_block_rows(rows: int, row_bytes: int, min_steps: int = 2) -> int:
    """Biggest row-tile that fits the VMEM budget, divides `rows`, is a
    multiple of 8 (unless full-extent), and leaves >= min_steps grid steps for
    large arrays so v7x's two TensorCores both get work."""
    budget = max(1, _MAX_BLOCK_BYTES // max(row_bytes, 1))
    if rows <= budget and (rows < 16 or rows % 8 != 0):
        return rows  # single full-extent block (toy / non-8-divisible shapes)
    cap = min(budget, rows)
    if rows % 8 == 0 and rows // 8 >= min_steps:
        cap = min(cap, rows // min_steps)
    for d in range(cap, 7, -1):
        if d % 8 == 0 and rows % d == 0:
            return d
    return rows  # fallback: full-extent block


def _identity_copy_2d(x2: jax.Array) -> jax.Array:
    rows, cols = x2.shape
    block_rows = _pick_block_rows(rows, cols * x2.dtype.itemsize)
    grid = (rows // block_rows,)
    nbytes = rows * cols * x2.dtype.itemsize
    return pl.pallas_call(
        _copy_kernel,
        out_shape=jax.ShapeDtypeStruct((rows, cols), x2.dtype),
        grid_spec=pltpu.PrefetchScalarGridSpec(
            num_scalar_prefetch=0,
            grid=grid,
            in_specs=[pl.BlockSpec((block_rows, cols), lambda i: (i, 0))],
            out_specs=pl.BlockSpec((block_rows, cols), lambda i: (i, 0)),
        ),
        # Output aliases the input buffer: no new HBM allocation / writeback.
        input_output_aliases={0: 0},
        cost_estimate=pl.CostEstimate(
            flops=0, transcendentals=0, bytes_accessed=2 * nbytes),
        compiler_params=pltpu.CompilerParams(
            dimension_semantics=("parallel",),
            vmem_limit_bytes=48 << 20,
        ),
    )(x2)


@functools.partial(jax.jit, donate_argnums=0)
def dummy_transformer_block(x: jax.Array) -> jax.Array:
    """Pallas equivalent of DummyTransformerBlock.forward(x) -> x."""
    orig_shape = x.shape
    total = x.size
    # Lane-dense flatten: last dim a multiple of 128 when possible so stores
    # are full-width; otherwise one full-extent row.
    if total % _LANES == 0:
        x2 = x.reshape(total // _LANES, _LANES)
    else:
        x2 = x.reshape(1, total)
    y2 = _identity_copy_2d(x2)
    return y2.reshape(orig_shape)


if __name__ == "__main__":
    key = jax.random.PRNGKey(0)
    batch, seq, emb = 2, 8, 32
    x = jax.random.normal(key, (batch, seq, emb), dtype=jnp.float32)

    # DummyTransformerBlock has no parameters, so there is nothing to init.
    # Snapshot the input on host before calling (the input buffer is donated).
    x_host = np.asarray(jax.device_get(x))

    y = jax.block_until_ready(dummy_transformer_block(x))

    assert y.shape == x_host.shape and y.dtype == x_host.dtype
    assert np.array_equal(np.asarray(y), x_host)
    print("KERNEL_OK")
</pallas_src>

<mosaic_0001>
module attributes {stable_mosaic.version = 11 : i64} {
  func.func @_copy_kernel(%arg0: i32, %arg1: memref<4x128xf32, #tpu.memory_space<vmem>>, %arg2: memref<4x128xf32, #tpu.memory_space<vmem>>) attributes {dimension_semantics = [#tpu.dimension_semantics<parallel>], iteration_bounds = array<i64: 1>, scalar_prefetch = 0 : i64, scratch_operands = 0 : i64, tpu.core_type = #tpu.core_type<tc>, window_params = [{transform_indices = @transform_0, window_bounds = array<i64: 4, 128>}, {transform_indices = @transform_1, window_bounds = array<i64: 4, 128>}]} {
    %c0 = arith.constant 0 : index
    %c0_0 = arith.constant 0 : index
    %0 = vector.load %arg1[%c0, %c0_0] : memref<4x128xf32, #tpu.memory_space<vmem>>, vector<4x128xf32>
    %c0_1 = arith.constant 0 : index
    %c0_2 = arith.constant 0 : index
    %1 = vector.load %arg2[%c0_1, %c0_2] : memref<4x128xf32, #tpu.memory_space<vmem>>, vector<4x128xf32>
    tpu.vector_store %arg2[%c0_1, %c0_2], %0 {strides = array<i32>} : memref<4x128xf32, #tpu.memory_space<vmem>>, vector<4x128xf32>,
    return
  }
  func.func @transform_0(%arg0: i32) -> (i32, i32) {
    %c0_i32 = arith.constant 0 : i32
    %c0_i32_0 = arith.constant 0 : i32
    return %arg0, %c0_i32 : i32, i32
  }
  func.func @transform_1(%arg0: i32) -> (i32, i32) {
    %c0_i32 = arith.constant 0 : i32
    %c0_i32_0 = arith.constant 0 : i32
    return %arg0, %c0_i32 : i32, i32
  }
}

</mosaic_0001>

<llo_original>
// kernel: dummy_transformer_block.1
$region0: #{dummy_transformer_block.1}
  #allocation0 [shape = 'u32[]', space=smem, size = 0x4, offset = 0x4, fixed_abs, tag = 'smem constant byte address 0x4 - core index']
  #allocation1 [shape = 'u32[144,128]{1,0:T(1,128)}', space=vmem, size = 0x12000, scoped, tag = 'internal scratch']
  %s0 = inlined_call_operand.vmem [shape: f32[4,128], index: 0, kind: input, shape index: {}, may-alias: {0,1}]
  %s1 = inlined_call_operand.vmem [shape: f32[4,128], index: 1, kind: output, shape index: {}, may-alias: {0,1}]
  %s2 = sld [smem:[#allocation0]]
  $region14: #{dummy_transformer_block.1} parent=0
    _
  %s4 = ssub.s32 1, %s2
  %s5 = scalar_select 0, %s4, %s2
  // Predicated region
  $region2: #{dummy_transformer_block.1} parent=0 // pred_check
    _
  $region3: #{dummy_transformer_block.1} parent=0 // pred_check_branch
    %7 = sbr.rel (0) target = $region5
  $region4: #{dummy_transformer_block.1} parent=0 // pred_region
    _
  $region5: #{dummy_transformer_block.1} parent=0 // pred_fallthru
    _
  %v8 = vld [vmem:[%s0] sm:$0xf]
  %9 = vst [vmem:[%s1] sm:$0xf] %v8
  // Predicated region
  $region6: #{dummy_transformer_block.1} parent=0 // pred_check
    _
  $region7: #{dummy_transformer_block.1} parent=0 // pred_check_branch
    %11 = sbr.rel (0) target = $region9
  $region8: #{dummy_transformer_block.1} parent=0 // pred_region
    _
  $region9: #{dummy_transformer_block.1} parent=0 // pred_fallthru
    _
  // Predicated region
  $region10: #{dummy_transformer_block.1} parent=0 // pred_check
    _
  $region11: #{dummy_transformer_block.1} parent=0 // pred_check_branch
    %13 = sbr.rel (0) target = $region13
  $region12: #{dummy_transformer_block.1} parent=0 // pred_region
    _
  $region13: #{dummy_transformer_block.1} parent=0 // pred_fallthru
    _

</llo_original>
